<compile_context>
chip_gen: v6e
topology: v6e:2x2x1
jax: 0.10.0
libtpu: 0.0.40
codegen_flags: <defaults>
</compile_context>

<pallas_src>
import functools

import jax
import jax.numpy as jnp
from jax.experimental import pallas as pl
from jax.experimental.pallas import tpu as pltpu


def _gat_kernel(f_src_ref, f_dst_ref, adj_ref, hy_ref, out_ref, acc_ref,
                *, alpha, fout, concat):
    m = pl.program_id(1)

    @pl.when(m == 0)
    def _init():
        acc_ref[...] = jnp.zeros_like(acc_ref)

    # score(i, j) = a_src.h[i] + a_dst.hy[j], precomputed outside as rank-1 parts.
    s = f_src_ref[...] + f_dst_ref[...]                       # (tN,1)+(1,tM) -> (tN,tM)
    lrelu = jnp.where(s >= 0, s, alpha * s)
    # edge_e on edges, 0 on non-edges (adj is an int8 0/1 mask).
    e = jnp.exp(-lrelu) * adj_ref[...].astype(jnp.float32)    # EUP exp is the bottleneck

    # hy_ref is hy padded to a lane-dense width with an extra all-ones column
    # at index `fout`, so one MXU matmul yields both edge_e @ hy (cols < fout)
    # and the rowsum normalizer (col fout).
    acc_ref[...] += jnp.dot(e, hy_ref[...], preferred_element_type=jnp.float32)

    @pl.when(m == pl.num_programs(1) - 1)
    def _finalize():
        acc = acc_ref[...]                                    # (tN, fout_pad)
        rowsum = acc[:, fout:fout + 1]                        # (tN, 1)
        inv = pl.reciprocal(rowsum, approx=True)
        h_prime = acc * inv
        # 0/0 (edge-less) or inf/inf (overflow) rows -> NaN -> 0, as in PyTorch.
        h_prime = jnp.where(jnp.isnan(h_prime), jnp.zeros_like(h_prime), h_prime)
        if concat:
            # F.elu with default alpha=1.0
            h_prime = jnp.where(h_prime > 0, h_prime, jnp.exp(h_prime) - 1.0)
        out_ref[...] = h_prime.astype(out_ref.dtype)


@functools.partial(jax.jit, static_argnames=("alpha", "concat", "block_n", "block_m"))
def sp_graph_attention(x, y, adj, W, a, *, alpha=0.2, concat=True,
                       block_n=128, block_m=128):
    N, fin = x.shape
    M, _ = y.shape
    fout = W.shape[1]
    f32 = jnp.float32

    x = x.astype(f32)
    y = y.astype(f32)
    W = W.astype(f32)
    a = a.astype(f32)

    # Fold `a` into W: h@a_src^T == x @ (W@a_src^T); kills the dead x@W matmul
    # and both in-kernel cross-lane reductions.
    wa_src = W @ a[:, :fout].T                                # (Fin, 1)
    wa_dst = W @ a[:, fout:].T                                # (Fin, 1)
    f_src = x @ wa_src                                        # (N, 1)
    f_dst = (y @ wa_dst).T                                    # (1, M) lane-major
    hy = y @ W                                                # (M, Fout), computed once

    # Lane-dense padded hy with an extra all-ones column for the rowsum.
    fout_pad = pl.cdiv(fout + 1, 128) * 128
    hy_pad = jnp.zeros((M, fout_pad), f32)
    hy_pad = hy_pad.at[:, :fout].set(hy).at[:, fout].set(1.0)

    # int8 adjacency mask: 4x smaller HBM stream / VMEM footprint than f32.
    adj_i8 = (adj != 0).astype(jnp.int8)

    # Round N / M up to tile multiples; padded rows/cols are masked off (adj=0).
    n_pad = pl.cdiv(N, block_n) * block_n
    m_pad = pl.cdiv(M, block_m) * block_m
    if n_pad != N or m_pad != M:
        f_src = jnp.pad(f_src, ((0, n_pad - N), (0, 0)))
        f_dst = jnp.pad(f_dst, ((0, 0), (0, m_pad - M)))
        adj_i8 = jnp.pad(adj_i8, ((0, n_pad - N), (0, m_pad - M)))
        hy_pad = jnp.pad(hy_pad, ((0, m_pad - M), (0, 0)))

    grid = (n_pad // block_n, m_pad // block_m)
    kernel = functools.partial(_gat_kernel, alpha=alpha, fout=fout, concat=concat)

    # TODO(synk): nn.Dropout on edge_e is identity in eval mode; not applied.
    out_pad = pl.pallas_call(
        kernel,
        out_shape=jax.ShapeDtypeStruct((n_pad, fout_pad), f32),
        grid=grid,
        in_specs=[
            pl.BlockSpec((block_n, 1), lambda n, m: (n, 0)),          # f_src
            pl.BlockSpec((1, block_m), lambda n, m: (0, m)),          # f_dst
            pl.BlockSpec((block_n, block_m), lambda n, m: (n, m)),    # adj (int8)
            pl.BlockSpec((block_m, fout_pad), lambda n, m: (m, 0)),   # hy_pad
        ],
        out_specs=pl.BlockSpec((block_n, fout_pad), lambda n, m: (n, 0)),
        scratch_shapes=[pltpu.VMEM((block_n, fout_pad), f32)],
        compiler_params=pltpu.CompilerParams(
            dimension_semantics=("parallel", "arbitrary"),
            vmem_limit_bytes=32 * 1024 * 1024,
        ),
    )(f_src, f_dst, adj_i8, hy_pad)

    return out_pad[:N, :fout]


def _reference(x, y, adj, W, a, *, alpha, concat):
    fout = W.shape[1]
    h = x @ W
    hy = y @ W
    s = (h @ a[:, :fout].T) + (hy @ a[:, fout:].T).T
    lrelu = jnp.where(s >= 0, s, alpha * s)
    e = jnp.where(adj != 0, jnp.exp(-lrelu), 0.0)
    rowsum = jnp.sum(e, axis=1, keepdims=True)
    hp = (e @ hy) / rowsum
    hp = jnp.where(jnp.isnan(hp), 0.0, hp)
    if concat:
        hp = jnp.where(hp > 0, hp, jnp.exp(hp) - 1.0)
    return hp


def _truncated_normal(key, shape, std=0.02, dtype=jnp.float32):
    # matches the spirit of the module's truncated_normal init (std=0.02)
    return std * jax.random.truncated_normal(key, -2.0, 2.0, shape, dtype)


if __name__ == "__main__":
    # Small shapes consistent with the module's forward:
    #   input: (N, in_features), y: (M, in_features), adj: sparse (N, M)
    N, M = 256, 384
    in_features, out_features = 64, 16
    alpha = 0.2

    key = jax.random.PRNGKey(0)
    k_x, k_y, k_w, k_a, k_adj = jax.random.split(key, 5)

    x = jax.random.normal(k_x, (N, in_features), dtype=jnp.float32)
    y = jax.random.normal(k_y, (M, in_features), dtype=jnp.float32)

    # Deterministic parameter init (truncated normal, std=0.02).
    W = _truncated_normal(k_w, (in_features, out_features))
    a = _truncated_normal(k_a, (1, 2 * out_features))

    # Sparse adjacency as a dense 0/1 mask; guarantee each row has >=1 edge.
    adj = jax.random.bernoulli(k_adj, 0.05, (N, M)).astype(jnp.float32)
    diag = jnp.zeros((N, M), jnp.float32).at[jnp.arange(N), jnp.arange(N) % M].set(1.0)
    adj = jnp.maximum(adj, diag)

    out = sp_graph_attention(x, y, adj, W, a, alpha=alpha, concat=True)
    out = jax.block_until_ready(out)

    ref = _reference(x, y, adj, W, a, alpha=alpha, concat=True)

    assert out.shape == (N, out_features)
    assert not bool(jnp.isnan(out).any())
    assert bool(jnp.allclose(out, ref, rtol=1e-2, atol=1e-2))
    print("KERNEL_OK")
</pallas_src>

<mosaic_0001>
module attributes {stable_mosaic.version = 11 : i64} {
  func.func @_gat_kernel(%arg0: i32, %arg1: i32, %arg2: memref<128x1xf32, #tpu.memory_space<vmem>>, %arg3: memref<1x128xf32, #tpu.memory_space<vmem>>, %arg4: memref<128x128xi8, #tpu.memory_space<vmem>>, %arg5: memref<128x128xf32, #tpu.memory_space<vmem>>, %arg6: memref<128x128xf32, #tpu.memory_space<vmem>>, %arg7: memref<128x128xf32, #tpu.memory_space<vmem>>) attributes {dimension_semantics = [#tpu.dimension_semantics<parallel>, #tpu.dimension_semantics<arbitrary>], iteration_bounds = array<i64: 2, 3>, scalar_prefetch = 0 : i64, scratch_operands = 1 : i64, tpu.core_type = #tpu.core_type<tc>, window_params = [{transform_indices = @transform_0, window_bounds = array<i64: 128, 1>}, {transform_indices = @transform_1, window_bounds = array<i64: 1, 128>}, {transform_indices = @transform_2, window_bounds = array<i64: 128, 128>}, {transform_indices = @transform_3, window_bounds = array<i64: 128, 128>}, {transform_indices = @transform_4, window_bounds = array<i64: 128, 128>}]} {
    %c0_i32 = arith.constant 0 : i32
    %0 = arith.cmpi eq, %arg1, %c0_i32 : i32
    %1 = arith.extui %0 : i1 to i32
    %c0_i32_0 = arith.constant 0 : i32
    %2 = arith.cmpi ne, %1, %c0_i32_0 : i32
    scf.if %2 {
      %cst_16 = arith.constant 0.000000e+00 : f32
      %27 = vector.broadcast %cst_16 : f32 to vector<128x128xf32>
      %c0_17 = arith.constant 0 : index
      %c0_18 = arith.constant 0 : index
      %28 = vector.load %arg7[%c0_17, %c0_18] : memref<128x128xf32, #tpu.memory_space<vmem>>, vector<128x128xf32>
      tpu.vector_store %arg7[%c0_17, %c0_18], %27 {strides = array<i32>} : memref<128x128xf32, #tpu.memory_space<vmem>>, vector<128x128xf32>,
    } else {
    }
    %c0 = arith.constant 0 : index
    %c0_1 = arith.constant 0 : index
    %3 = vector.load %arg2[%c0, %c0_1] : memref<128x1xf32, #tpu.memory_space<vmem>>, vector<128x1xf32>
    %c0_2 = arith.constant 0 : index
    %c0_3 = arith.constant 0 : index
    %4 = vector.load %arg3[%c0_2, %c0_3] : memref<1x128xf32, #tpu.memory_space<vmem>>, vector<1x128xf32>
    %5 = vector.broadcast %3 : vector<128x1xf32> to vector<128x128xf32>
    %6 = vector.broadcast %4 : vector<1x128xf32> to vector<128x128xf32>
    %7 = arith.addf %5, %6 : vector<128x128xf32>
    %cst = arith.constant 0.000000e+00 : f32
    %8 = vector.broadcast %cst : f32 to vector<128x128xf32>
    %9 = arith.cmpf oge, %7, %8 : vector<128x128xf32>
    %cst_4 = arith.constant 2.000000e-01 : f32
    %10 = vector.broadcast %cst_4 : f32 to vector<128x128xf32>
    %11 = arith.mulf %10, %7 : vector<128x128xf32>
    %12 = arith.select %9, %7, %11 : vector<128x128xi1>, vector<128x128xf32>
    %cst_5 = arith.constant 0.000000e+00 : f32
    %13 = vector.broadcast %cst_5 : f32 to vector<128x128xf32>
    %14 = arith.subf %13, %12 : vector<128x128xf32>
    %15 = math.exp %14 : vector<128x128xf32>
    %c0_6 = arith.constant 0 : index
    %c0_7 = arith.constant 0 : index
    %16 = vector.load %arg4[%c0_6, %c0_7] : memref<128x128xi8, #tpu.memory_space<vmem>>, vector<128x128xi8>
    %17 = arith.sitofp %16 : vector<128x128xi8> to vector<128x128xf32>
    %18 = arith.mulf %15, %17 : vector<128x128xf32>
    %c0_8 = arith.constant 0 : index
    %c0_9 = arith.constant 0 : index
    %19 = vector.load %arg7[%c0_8, %c0_9] : memref<128x128xf32, #tpu.memory_space<vmem>>, vector<128x128xf32>
    %c0_10 = arith.constant 0 : index
    %c0_11 = arith.constant 0 : index
    %20 = vector.load %arg5[%c0_10, %c0_11] : memref<128x128xf32, #tpu.memory_space<vmem>>, vector<128x128xf32>
    %cst_12 = arith.constant dense<0.000000e+00> : vector<128x128xf32>
    %21 = tpu.matmul %18, %20, %cst_12 {dimension_numbers = #tpu.dot_dimension_numbers<[1], [0], [0], [1], [0, 0, 1, 1], [], []>} : vector<128x128xf32>, vector<128x128xf32>, vector<128x128xf32> -> vector<128x128xf32>
    %22 = arith.addf %19, %21 : vector<128x128xf32>
    %c0_13 = arith.constant 0 : index
    %c0_14 = arith.constant 0 : index
    %23 = vector.load %arg7[%c0_13, %c0_14] : memref<128x128xf32, #tpu.memory_space<vmem>>, vector<128x128xf32>
    tpu.vector_store %arg7[%c0_13, %c0_14], %22 {strides = array<i32>} : memref<128x128xf32, #tpu.memory_space<vmem>>, vector<128x128xf32>,
    %c2_i32 = arith.constant 2 : i32
    %24 = arith.cmpi eq, %arg1, %c2_i32 : i32
    %25 = arith.extui %24 : i1 to i32
    %c0_i32_15 = arith.constant 0 : i32
    %26 = arith.cmpi ne, %25, %c0_i32_15 : i32
    scf.if %26 {
      %c0_16 = arith.constant 0 : index
      %c0_17 = arith.constant 0 : index
      %27 = vector.load %arg7[%c0_16, %c0_17] : memref<128x128xf32, #tpu.memory_space<vmem>>, vector<128x128xf32>
      %28 = vector.extract_strided_slice %27 {offsets = [0, 16], sizes = [128, 1], strides = [1, 1]} : vector<128x128xf32> to vector<128x1xf32>
      %29 = tpu.reciprocal %28 {approx = true} : vector<128x1xf32> -> vector<128x1xf32>
      %30 = vector.broadcast %29 : vector<128x1xf32> to vector<128x128xf32>
      %31 = arith.mulf %27, %30 : vector<128x128xf32>
      %32 = arith.cmpf one, %31, %31 : vector<128x128xf32>
      %cst_18 = arith.constant 0.000000e+00 : f32
      %33 = vector.broadcast %cst_18 : f32 to vector<128x128xf32>
      %34 = arith.select %32, %33, %31 : vector<128x128xi1>, vector<128x128xf32>
      %cst_19 = arith.constant 0.000000e+00 : f32
      %35 = vector.broadcast %cst_19 : f32 to vector<128x128xf32>
      %36 = arith.cmpf ogt, %34, %35 : vector<128x128xf32>
      %37 = math.exp %34 : vector<128x128xf32>
      %cst_20 = arith.constant 1.000000e+00 : f32
      %38 = vector.broadcast %cst_20 : f32 to vector<128x128xf32>
      %39 = arith.subf %37, %38 : vector<128x128xf32>
      %40 = arith.select %36, %34, %39 : vector<128x128xi1>, vector<128x128xf32>
      %c0_21 = arith.constant 0 : index
      %c0_22 = arith.constant 0 : index
      %41 = vector.load %arg6[%c0_21, %c0_22] : memref<128x128xf32, #tpu.memory_space<vmem>>, vector<128x128xf32>
      tpu.vector_store %arg6[%c0_21, %c0_22], %40 {strides = array<i32>} : memref<128x128xf32, #tpu.memory_space<vmem>>, vector<128x128xf32>,
    } else {
    }
    return
  }
  func.func @transform_0(%arg0: i32, %arg1: i32) -> (i32, i32) {
    %c0_i32 = arith.constant 0 : i32
    %c0_i32_0 = arith.constant 0 : i32
    return %arg0, %c0_i32 : i32, i32
  }
  func.func @transform_1(%arg0: i32, %arg1: i32) -> (i32, i32) {
    %c0_i32 = arith.constant 0 : i32
    %c0_i32_0 = arith.constant 0 : i32
    return %c0_i32, %arg1 : i32, i32
  }
  func.func @transform_2(%arg0: i32, %arg1: i32) -> (i32, i32) {
    %c0_i32 = arith.constant 0 : i32
    return %arg0, %arg1 : i32, i32
  }
  func.func @transform_3(%arg0: i32, %arg1: i32) -> (i32, i32) {
    %c0_i32 = arith.constant 0 : i32
    %c0_i32_0 = arith.constant 0 : i32
    return %arg1, %c0_i32 : i32, i32
  }
  func.func @transform_4(%arg0: i32, %arg1: i32) -> (i32, i32) {
    %c0_i32 = arith.constant 0 : i32
    %c0_i32_0 = arith.constant 0 : i32
    return %arg0, %c0_i32 : i32, i32
  }
}

</mosaic_0001>

<llo_original>
// kernel: sp_graph_attention.1
$region0: #{sp_graph_attention.1}
  #allocation0 [shape = 'u32[]', space=smem, size = 0x4, offset = 0x4, fixed_abs, tag = 'smem constant byte address 0x4 - core index']
  #allocation1 [shape = 'u32[144,128]{1,0:T(1,128)}', space=vmem, size = 0x12000, scoped, tag = 'internal scratch']
  #allocation2 [shape = 'f32[128,128]{1,0:T(8,128)}', space=vmem, size = 0x10000, scoped, tag = 'scratch operand']
  %s0 = inlined_call_operand.vmem [shape: f32[256,1], index: 0, kind: input, shape index: {}]
  %s1 = inlined_call_operand.vmem [shape: f32[1,384], index: 1, kind: input, shape index: {}]
  %s2 = inlined_call_operand.vmem [shape: s8[256,384], index: 2, kind: input, shape index: {}]
  %s3 = inlined_call_operand.vmem [shape: f32[384,128], index: 3, kind: input, shape index: {}]
  %s4 = inlined_call_operand.vmem [shape: f32[256,128], index: 4, kind: output, shape index: {}]
  %s5 = sld [smem:[#allocation0]]
  $region95: #{sp_graph_attention.1} parent=0
    _
  %s7 = ssub.s32 1, %s5
  %s8 = scalar_select 0, %s7, %s5
  $region1: #{sp_graph_attention.1} parent=0
    #allocation3 [shape = 'u8[32768]{0}', space=vmem, size = 0x8000, scoped, tag = 'input window, operand 2']
    loop: start=0, step=1, limit=8
    $region2: #{sp_graph_attention.1} parent=1 // loop_pre_header
      _
    $region3: #{sp_graph_attention.1} parent=1 // loop_header
      %s10 = sphi 0, %s14
      %p11 = scmp.ge.s32.totalorder %s10, 8
      %s17 = sphi 0, %s29
      %s18 = sphi 0, %s25
      %s19 = sphi 0, %s17
      %s20 = sphi 0, %s18
      %s21 = sphi 0, %s19
      %s22 = sphi 0, %s20
      %s32 = sphi 0, %s34
      %s35 = sphi 0, %s32
      %s36 = sphi 0, %s35
      %s52 = sphi 0, %s36
      %s58 = sphi 0, %s60
      %s61 = sphi 0, %s58
      %s62 = sphi 0, %s61
      %s78 = sphi 0, %s62
      %s86 = sphi 0, %s88
      %s89 = sphi 0, %s86
      %s90 = sphi 0, %s89
      %s106 = sphi 0, %s90
      %s112 = sphi 0, %s114
      %s115 = sphi 0, %s112
      %s116 = sphi 0, %s115
      %s132 = sphi 0, %s116
      %s138 = sphi 0, %s140
      %s141 = sphi 0, %s138
      %s142 = sphi 0, %s141
      %s158 = sphi 0, %s142
    $region4: #{sp_graph_attention.1} parent=1 // loop_header_branch
      %13 = sbr.rel (%p11) target = $region8
    $region5: #{sp_graph_attention.1} parent=1 // loop_body
      %s15 = ssub.s32 %s10, 1
      %s16 = ssub.s32 %s10, 2
      %s23 = sadd.s32 1, %s18
      %p24 = scmp.ge.s32.totalorder %s23, 3
      %s25 = scalar_select %p24, 0, %s23
      %s26 = sadd.s32 1, %s17
      %s27 = scalar_select %p24, %s26, %s17
      %p28 = scmp.ge.s32.totalorder %s27, 2
      %s29 = scalar_select %p28, 0, %s27
      %s30 = ssub.s32 %s17, %s29
      %p31 = scmp.eq.s32.totalorder %s30, 0
      %s33 = sadd.s32 %s32, 1
      %s34 = scalar_select %p31, %s32, %s33
      %p37 = pneg %p31
      %p38 = scmp.eq.s32.totalorder %s10, 5
      %p39 = por %p37, %p38
      %p40 = scmp.ne.s32.totalorder %s32, %s35
      %p41 = scmp.eq.s32.totalorder %s10, 0
      %p42 = por %p40, %p41
      %p43 = scmp.ne.s32.totalorder %s32, %s35
      %p44 = scmp.eq.s32.totalorder %s15, 5
      %p45 = por %p43, %p44
      %p46 = scmp.ne.s32.totalorder %s35, %s36
      %p47 = scmp.eq.s32.totalorder %s15, 0
      %p48 = por %p46, %p47
      %p49 = scmp.ne.s32.totalorder %s35, %s36
      %p50 = scmp.eq.s32.totalorder %s16, 5
      %p51 = por %p49, %p50
      %p53 = scmp.ne.s32.totalorder %s36, %s52
      %p54 = scmp.eq.s32.totalorder %s16, 0
      %p55 = por %p53, %p54
      %s56 = ssub.s32 %s18, %s25
      %p57 = scmp.eq.s32.totalorder %s56, 0
      %s59 = sadd.s32 %s58, 1
      %s60 = scalar_select %p57, %s58, %s59
      %p63 = pneg %p57
      %p64 = scmp.eq.s32.totalorder %s10, 5
      %p65 = por %p63, %p64
      %p66 = scmp.ne.s32.totalorder %s58, %s61
      %p67 = scmp.eq.s32.totalorder %s10, 0
      %p68 = por %p66, %p67
      %p69 = scmp.ne.s32.totalorder %s58, %s61
      %p70 = scmp.eq.s32.totalorder %s15, 5
      %p71 = por %p69, %p70
      %p72 = scmp.ne.s32.totalorder %s61, %s62
      %p73 = scmp.eq.s32.totalorder %s15, 0
      %p74 = por %p72, %p73
      %p75 = scmp.ne.s32.totalorder %s61, %s62
      %p76 = scmp.eq.s32.totalorder %s16, 5
      %p77 = por %p75, %p76
      %p79 = scmp.ne.s32.totalorder %s62, %s78
      %p80 = scmp.eq.s32.totalorder %s16, 0
      %p81 = por %p79, %p80
      %s82 = ssub.s32 %s17, %s29
      %s83 = ssub.s32 %s18, %s25
      %s84 = sor.u32 %s82, %s83
      %p85 = scmp.eq.s32.totalorder %s84, 0
      %s87 = sadd.s32 %s86, 1
      %s88 = scalar_select %p85, %s86, %s87
      %p91 = pneg %p85
      %p92 = scmp.eq.s32.totalorder %s10, 5
      %p93 = por %p91, %p92
      %p94 = scmp.ne.s32.totalorder %s86, %s89
      %p95 = scmp.eq.s32.totalorder %s10, 0
      %p96 = por %p94, %p95
      %p97 = scmp.ne.s32.totalorder %s86, %s89
      %p98 = scmp.eq.s32.totalorder %s15, 5
      %p99 = por %p97, %p98
      %p100 = scmp.ne.s32.totalorder %s89, %s90
      %p101 = scmp.eq.s32.totalorder %s15, 0
      %p102 = por %p100, %p101
      %p103 = scmp.ne.s32.totalorder %s89, %s90
      %p104 = scmp.eq.s32.totalorder %s16, 5
      %p105 = por %p103, %p104
      %p107 = scmp.ne.s32.totalorder %s90, %s106
      %p108 = scmp.eq.s32.totalorder %s16, 0
      %p109 = por %p107, %p108
      %s110 = ssub.s32 %s18, %s25
      %p111 = scmp.eq.s32.totalorder %s110, 0
      %s113 = sadd.s32 %s112, 1
      %s114 = scalar_select %p111, %s112, %s113
      %p117 = pneg %p111
      %p118 = scmp.eq.s32.totalorder %s10, 5
      %p119 = por %p117, %p118
      %p120 = scmp.ne.s32.totalorder %s112, %s115
      %p121 = scmp.eq.s32.totalorder %s10, 0
      %p122 = por %p120, %p121
      %p123 = scmp.ne.s32.totalorder %s112, %s115
      %p124 = scmp.eq.s32.totalorder %s15, 5
      %p125 = por %p123, %p124
      %p126 = scmp.ne.s32.totalorder %s115, %s116
      %p127 = scmp.eq.s32.totalorder %s15, 0
      %p128 = por %p126, %p127
      %p129 = scmp.ne.s32.totalorder %s115, %s116
      %p130 = scmp.eq.s32.totalorder %s16, 5
      %p131 = por %p129, %p130
      %p133 = scmp.ne.s32.totalorder %s116, %s132
      %p134 = scmp.eq.s32.totalorder %s16, 0
      %p135 = por %p133, %p134
      %s136 = ssub.s32 %s17, %s29
      %p137 = scmp.eq.s32.totalorder %s136, 0
      %s139 = sadd.s32 %s138, 1
      %s140 = scalar_select %p137, %s138, %s139
      %p143 = pneg %p137
      %p144 = scmp.eq.s32.totalorder %s10, 5
      %p145 = por %p143, %p144
      %p146 = scmp.ne.s32.totalorder %s138, %s141
      %p147 = scmp.eq.s32.totalorder %s10, 0
      %p148 = por %p146, %p147
      %p149 = scmp.ne.s32.totalorder %s138, %s141
      %p150 = scmp.eq.s32.totalorder %s15, 5
      %p151 = por %p149, %p150
      %p152 = scmp.ne.s32.totalorder %s141, %s142
      %p153 = scmp.eq.s32.totalorder %s15, 0
      %p154 = por %p152, %p153
      %p155 = scmp.ne.s32.totalorder %s141, %s142
      %p156 = scmp.eq.s32.totalorder %s16, 5
      %p157 = por %p155, %p156
      %p159 = scmp.ne.s32.totalorder %s142, %s158
      %p160 = scmp.eq.s32.totalorder %s16, 0
      %p161 = por %p159, %p160
      %p162 = scmp.le.s32.totalorder 1, %s10
      %p163 = scmp.lt.s32.totalorder %s10, 7
      %p164 = pnand %p162, %p163
      %p165 = pneg %p164
      // Predicated region
      $region9: #{sp_graph_attention.1} parent=5 // pred_check
        _
      $region10: #{sp_graph_attention.1} parent=5 // pred_check_branch
        %167 = sbr.rel (%p164) target = $region12
      $region11: #{sp_graph_attention.1} parent=5 // pred_region
        %s168 = ssub.s32 %s10, 1
      $region12: #{sp_graph_attention.1} parent=5 // pred_fallthru
        _
      %p169 = scmp.lt.s32.totalorder %s10, 6
      // Predicated region
      $region13: #{sp_graph_attention.1} parent=5 // pred_check
        %p170 = pneg %p169
      $region14: #{sp_graph_attention.1} parent=5 // pred_check_branch
        %172 = sbr.rel (%p170) target = $region16
      $region15: #{sp_graph_attention.1} parent=5 // pred_region
        // Predicated region
        $region17: #{sp_graph_attention.1} parent=15 // pred_check
          %p173 = pneg %p42
        $region18: #{sp_graph_attention.1} parent=15 // pred_check_branch
          %175 = sbr.rel (%p173) target = $region20
        $region19: #{sp_graph_attention.1} parent=15 // pred_region
          %s176 = smul.u32 16, %s17
          %p177 = scmp.lt.s32.totalorder %s176, 31
          %s178 = scalar_select %p177, %s176, 31
          %s179 = smul.addr %s178, 8
          %s180 = scalar_lea.vmem %s0, %s179
          %s181 = smul.u32 16, %s17
        $region20: #{sp_graph_attention.1} parent=15 // pred_fallthru
          _
        // Predicated region
        $region21: #{sp_graph_attention.1} parent=15 // pred_check
          %p182 = pneg %p68
        $region22: #{sp_graph_attention.1} parent=15 // pred_check_branch
          %184 = sbr.rel (%p182) target = $region24
        $region23: #{sp_graph_attention.1} parent=15 // pred_region
          %p185 = scmp.lt.s32.totalorder %s18, 2
          %s186 = scalar_select %p185, %s18, 2
          %s187 = scalar_lea.vmem %s1, %s186
        $region24: #{sp_graph_attention.1} parent=15 // pred_fallthru
          _
        // Predicated region
        $region25: #{sp_graph_attention.1} parent=15 // pred_check
          %p188 = pneg %p96
        $region26: #{sp_graph_attention.1} parent=15 // pred_check_branch
          %190 = sbr.rel (%p188) target = $region28
        $region27: #{sp_graph_attention.1} parent=15 // pred_region
          %s191 = sand.u32 %s86, 1
          %s192 = sand.u32 %s86, 1
          %s193 = smul.addr %s192, 32
          %s194 = scalar_lea.vmem [#allocation3], %s193
          %s195 = smul.u32 4, %s17
          %s196 = smul.addr %s195, 3
          %s197 = sadd.s32 %s18, %s196
          %s198 = smul.addr %s197, 8
          %s199 = scalar_lea.vmem %s2, %s198
          // Predicated region
          $region29: #{sp_graph_attention.1} parent=27 // pred_check
            _
          $region30: #{sp_graph_attention.1} parent=27 // pred_check_branch
            %201 = sbr.rel (0) target = $region32
          $region31: #{sp_graph_attention.1} parent=27 // pred_region
            // Predicated region
            $region33: #{sp_graph_attention.1} parent=31 // pred_check
              _
            $region34: #{sp_graph_attention.1} parent=31 // pred_check_branch
              %203 = sbr.rel (0) target = $region36
            $region35: #{sp_graph_attention.1} parent=31 // pred_region
              // Predicated region
              $region48: #{sp_graph_attention.1} parent=35 // pred_check
                _
              $region49: #{sp_graph_attention.1} parent=35 // pred_check_branch
                %225 = sbr.rel (0) target = $region51
              $region50: #{sp_graph_attention.1} parent=35 // pred_region
                loop: start=0, step=1, limit=1
                $region52: #{sp_graph_attention.1} parent=50 // loop_pre_header
                  _
                $region53: #{sp_graph_attention.1} parent=50 // loop_header
                  %s227 = sphi 0, %s231
                  %p228 = scmp.ge.s32.totalorder %s227, 1
                  %s232 = sphi %s199, %s199
                  %s233 = sphi %s194, %s194
                $region54: #{sp_graph_attention.1} parent=50 // loop_header_branch
                  %230 = sbr.rel (%p228) target = $region58
                $region55: #{sp_graph_attention.1} parent=50 // loop_body
                  %v234 = vld [vmem:[%s232] sm:$0xff]
                  %235 = vst [vmem:[%s233] sm:$0xff] %v234
                  %v236 = vld [vmem:[%s232 + $0x18] sm:$0xff]
                  %237 = vst [vmem:[%s233 + $0x8] sm:$0xff] %v236
                  %v238 = vld [vmem:[%s232 + $0x30] sm:$0xff]
                  %239 = vst [vmem:[%s233 + $0x10] sm:$0xff] %v238
                  %v240 = vld [vmem:[%s232 + $0x48] sm:$0xff]
                  %241 = vst [vmem:[%s233 + $0x18] sm:$0xff] %v240
                $region56: #{sp_graph_attention.1} parent=50 // loop_footer
                  %s231 = sadd.s32 1, %s227
                $region57: #{sp_graph_attention.1} parent=50 // loop_footer_branch
                  %226 = sbr.rel target = $region53
                $region58: #{sp_graph_attention.1} parent=50 // loop_exit
                  _
              $region51: #{sp_graph_attention.1} parent=35 // pred_fallthru
                _
              // Predicated region
              $region59: #{sp_graph_attention.1} parent=35 // pred_check
                _
              $region60: #{sp_graph_attention.1} parent=35 // pred_check_branch
                %243 = sbr.rel target = $region62
              $region61: #{sp_graph_attention.1} parent=35 // pred_region
                _
              $region62: #{sp_graph_attention.1} parent=35 // pred_fallthru
                _
            $region36: #{sp_graph_attention.1} parent=31 // pred_fallthru
              _
            // Predicated region
            $region37: #{sp_graph_attention.1} parent=31 // pred_check
              _
            $region38: #{sp_graph_attention.1} parent=31 // pred_check_branch
              %205 = sbr.rel target = $region40
            $region39: #{sp_graph_attention.1} parent=31 // pred_region
              %s207 = ssub.s32 256, 1
              loop: start=0, step=1, limit=1
              $region41: #{sp_graph_attention.1} parent=39 // loop_pre_header
                _
              $region42: #{sp_graph_attention.1} parent=39 // loop_header
                %s209 = sphi 0, %s213
                %p210 = scmp.ge.s32.totalorder %s209, 1
                %s214 = sphi %s199, %s199
                %s215 = sphi %s194, %s194
              $region43: #{sp_graph_attention.1} parent=39 // loop_header_branch
                %212 = sbr.rel (%p210) target = $region47
              $region44: #{sp_graph_attention.1} parent=39 // loop_body
                %v216 = vld [vmem:[%s214] sm:%s207]
                %217 = vst [vmem:[%s215] sm:%s207] %v216
                %v218 = vld [vmem:[%s214 + $0x18] sm:%s207]
                %219 = vst [vmem:[%s215 + $0x8] sm:%s207] %v218
                %v220 = vld [vmem:[%s214 + $0x30] sm:%s207]
                %221 = vst [vmem:[%s215 + $0x10] sm:%s207] %v220
                %v222 = vld [vmem:[%s214 + $0x48] sm:%s207]
                %223 = vst [vmem:[%s215 + $0x18] sm:%s207] %v222
              $region45: #{sp_graph_attention.1} parent=39 // loop_footer
                %s213 = sadd.s32 1, %s209
              $region46: #{sp_graph_attention.1} parent=39 // loop_footer_branch
                %208 = sbr.rel target = $region42
              $region47: #{sp_graph_attention.1} parent=39 // loop_exit
                _
            $region40: #{sp_graph_attention.1} parent=31 // pred_fallthru
              _
          $region32: #{sp_graph_attention.1} parent=27 // pred_fallthru
            _
          %244 = vnop
        $region28: #{sp_graph_attention.1} parent=15 // pred_fallthru
          _
        // Predicated region
        $region63: #{sp_graph_attention.1} parent=15 // pred_check
          %p245 = pneg %p122
        $region64: #{sp_graph_attention.1} parent=15 // pred_check_branch
          %247 = sbr.rel (%p245) target = $region66
        $region65: #{sp_graph_attention.1} parent=15 // pred_region
          %s248 = smul.u32 16, %s18
          %p249 = scmp.lt.s32.totalorder %s248, 47
          %s250 = scalar_select %p249, %s248, 47
          %s251 = smul.addr %s250, 8
          %s252 = scalar_lea.vmem %s3, %s251
          %s253 = smul.u32 16, %s18
        $region66: #{sp_graph_attention.1} parent=15 // pred_fallthru
          _
      $region16: #{sp_graph_attention.1} parent=5 // pred_fallthru
        _
      %p254 = scmp.le.s32.totalorder 1, %s10
      %p255 = scmp.lt.s32.totalorder %s10, 7
      %p256 = pnand %p254, %p255
      %p257 = pneg %p256
      // Predicated region
      $region67: #{sp_graph_attention.1} parent=5 // pred_check
        _
      $region68: #{sp_graph_attention.1} parent=5 // pred_check_branch
        %259 = sbr.rel (%p256) target = $region70
      $region69: #{sp_graph_attention.1} parent=5 // pred_region
        %s260 = ssub.s32 %s10, 1
        %s261 = sand.u32 %s89, 1
        %s262 = sand.u32 %s89, 1
        %s263 = smul.addr %s262, 32
        %s264 = scalar_lea.vmem [#allocation3], %s263
        // Predicated region
        $region71: #{sp_graph_attention.1} parent=69 // pred_check
          %p265 = pneg %p102
        $region72: #{sp_graph_attention.1} parent=69 // pred_check_branch
          %267 = sbr.rel (%p265) target = $region74
        $region73: #{sp_graph_attention.1} parent=69 // pred_region
          _
        $region74: #{sp_graph_attention.1} parent=69 // pred_fallthru
          _
        %s268 = smul.u32 16, %s19
        %p269 = scmp.lt.s32.totalorder %s268, 31
        %s270 = scalar_select %p269, %s268, 31
        %s271 = smul.addr %s270, 8
        %s272 = scalar_lea.vmem %s0, %s271
        %p273 = pneg %p48
        %p274 = pneg %p45
        %p275 = scmp.lt.s32.totalorder %s20, 2
        %s276 = scalar_select %p275, %s20, 2
        %s277 = scalar_lea.vmem %s1, %s276
        %p278 = pneg %p74
        %p279 = pneg %p71
        %s280 = sand.u32 %s89, 1
        %s281 = sand.u32 %s89, 1
        %s282 = smul.addr %s281, 32
        %s283 = scalar_lea.vmem [#allocation3], %s282
        %p284 = pneg %p102
        %p285 = pneg %p99
        %s286 = smul.u32 16, %s20
        %p287 = scmp.lt.s32.totalorder %s286, 47
        %s288 = scalar_select %p287, %s286, 47
        %s289 = smul.addr %s288, 8
        %s290 = scalar_lea.vmem %s3, %s289
        %p291 = pneg %p128
        %p292 = pneg %p125
        %p293 = pneg %p154
        %p294 = pneg %p151
        %s295 = smul.u32 16, %s19
        %p296 = scmp.lt.s32.totalorder %s295, 31
        %s297 = scalar_select %p296, %s295, 31
        %s298 = smul.addr %s297, 8
        %s299 = scalar_lea.vmem %s4, %s298
        %s300 = smul.u32 16, %s19
        %p301 = scmp.lt.s32.totalorder %s300, 31
        %s302 = scalar_select %p301, %s300, 31
        %s303 = smul.addr %s302, 8
        %s304 = scalar_lea.vmem %s0, %s303
        %s305 = smul.u32 16, %s19
        %p306 = scmp.lt.s32.totalorder %s20, 2
        %s307 = scalar_select %p306, %s20, 2
        %s308 = scalar_lea.vmem %s1, %s307
        %s309 = smul.u32 4, %s19
        %s310 = smul.u32 16, %s20
        %p311 = scmp.lt.s32.totalorder %s310, 47
        %s312 = scalar_select %p311, %s310, 47
        %s313 = smul.addr %s312, 8
        %s314 = scalar_lea.vmem %s3, %s313
        %s315 = smul.u32 16, %s20
        %s316 = smul.u32 16, %s19
        %p317 = scmp.lt.s32.totalorder %s316, 31
        %s318 = scalar_select %p317, %s316, 31
        %s319 = smul.addr %s318, 8
        %s320 = scalar_lea.vmem %s4, %s319
        %s321 = smul.u32 16, %s19
        %p322 = scmp.eq.s32.totalorder %s20, 0
        // Predicated region
        $region75: #{sp_graph_attention.1} parent=69 // pred_check
          %p323 = pneg %p322
        $region76: #{sp_graph_attention.1} parent=69 // pred_check_branch
          %325 = sbr.rel (%p323) target = $region78
        $region77: #{sp_graph_attention.1} parent=69 // pred_region
          %326 = vst [vmem:[#allocation2] sm:$0xff] 0.0
          %327 = vst [vmem:[#allocation2 + $0x8] sm:$0xff] 0.0
          %328 = vst [vmem:[#allocation2 + $0x10] sm:$0xff] 0.0
          %329 = vst [vmem:[#allocation2 + $0x18] sm:$0xff] 0.0
          %330 = vst [vmem:[#allocation2 + $0x20] sm:$0xff] 0.0
          %331 = vst [vmem:[#allocation2 + $0x28] sm:$0xff] 0.0
          %332 = vst [vmem:[#allocation2 + $0x30] sm:$0xff] 0.0
          %333 = vst [vmem:[#allocation2 + $0x38] sm:$0xff] 0.0
          %334 = vst [vmem:[#allocation2 + $0x40] sm:$0xff] 0.0
          %335 = vst [vmem:[#allocation2 + $0x48] sm:$0xff] 0.0
          %336 = vst [vmem:[#allocation2 + $0x50] sm:$0xff] 0.0
          %337 = vst [vmem:[#allocation2 + $0x58] sm:$0xff] 0.0
          %338 = vst [vmem:[#allocation2 + $0x60] sm:$0xff] 0.0
          %339 = vst [vmem:[#allocation2 + $0x68] sm:$0xff] 0.0
          %340 = vst [vmem:[#allocation2 + $0x70] sm:$0xff] 0.0
          %341 = vst [vmem:[#allocation2 + $0x78] sm:$0xff] 0.0
        $region78: #{sp_graph_attention.1} parent=69 // pred_fallthru
          _
        %v342 = vld [vmem:[%s304] sm:$0xff]
        %v343 = vld [vmem:[%s304 + $0x8] sm:$0xff]
        %v344 = vld [vmem:[%s304 + $0x10] sm:$0xff]
        %v345 = vld [vmem:[%s304 + $0x18] sm:$0xff]
        %v346 = vld [vmem:[%s304 + $0x20] sm:$0xff]
        %v347 = vld [vmem:[%s304 + $0x28] sm:$0xff]
        %v348 = vld [vmem:[%s304 + $0x30] sm:$0xff]
        %v349 = vld [vmem:[%s304 + $0x38] sm:$0xff]
        %v350 = vld [vmem:[%s304 + $0x40] sm:$0xff]
        %v351 = vld [vmem:[%s304 + $0x48] sm:$0xff]
        %v352 = vld [vmem:[%s304 + $0x50] sm:$0xff]
        %v353 = vld [vmem:[%s304 + $0x58] sm:$0xff]
        %v354 = vld [vmem:[%s304 + $0x60] sm:$0xff]
        %v355 = vld [vmem:[%s304 + $0x68] sm:$0xff]
        %v356 = vld [vmem:[%s304 + $0x70] sm:$0xff]
        %v357 = vld [vmem:[%s304 + $0x78] sm:$0xff]
        %v358 = vld [vmem:[%s308] sm:$0x1]
        %360 = vset.pattern.permute.xlu0 0
        %361 = vperm.xlu0 %360, %v342
        %v362 = vpop.permute.xlu0 %361
        %365 = vset.pattern.permute.xlu0 0
        %366 = vperm.xlu0 %365, %v343
        %v367 = vpop.permute.xlu0 %366
        %370 = vset.pattern.permute.xlu0 0
        %371 = vperm.xlu0 %370, %v344
        %v372 = vpop.permute.xlu0 %371
        %375 = vset.pattern.permute.xlu0 0
        %376 = vperm.xlu0 %375, %v345
        %v377 = vpop.permute.xlu0 %376
        %380 = vset.pattern.permute.xlu0 0
        %381 = vperm.xlu0 %380, %v346
        %v382 = vpop.permute.xlu0 %381
        %385 = vset.pattern.permute.xlu0 0
        %386 = vperm.xlu0 %385, %v347
        %v387 = vpop.permute.xlu0 %386
        %390 = vset.pattern.permute.xlu0 0
        %391 = vperm.xlu0 %390, %v348
        %v392 = vpop.permute.xlu0 %391
        %395 = vset.pattern.permute.xlu0 0
        %396 = vperm.xlu0 %395, %v349
        %v397 = vpop.permute.xlu0 %396
        %400 = vset.pattern.permute.xlu0 0
        %401 = vperm.xlu0 %400, %v350
        %v402 = vpop.permute.xlu0 %401
        %405 = vset.pattern.permute.xlu0 0
        %406 = vperm.xlu0 %405, %v351
        %v407 = vpop.permute.xlu0 %406
        %410 = vset.pattern.permute.xlu0 0
        %411 = vperm.xlu0 %410, %v352
        %v412 = vpop.permute.xlu0 %411
        %415 = vset.pattern.permute.xlu0 0
        %416 = vperm.xlu0 %415, %v353
        %v417 = vpop.permute.xlu0 %416
        %420 = vset.pattern.permute.xlu0 0
        %421 = vperm.xlu0 %420, %v354
        %v422 = vpop.permute.xlu0 %421
        %425 = vset.pattern.permute.xlu0 0
        %426 = vperm.xlu0 %425, %v355
        %v427 = vpop.permute.xlu0 %426
        %430 = vset.pattern.permute.xlu0 0
        %431 = vperm.xlu0 %430, %v356
        %v432 = vpop.permute.xlu0 %431
        %435 = vset.pattern.permute.xlu0 0
        %436 = vperm.xlu0 %435, %v357
        %v437 = vpop.permute.xlu0 %436
        %v440 = vlaneseq
        %v441 = vshrl.u32 %v440, 7
        %v442 = vsub.s32 0, %v441
        %v443 = vrot.slane %v358, %v442
        %v445 = vadd.f32 %v362, %v443
        %v446 = vadd.f32 %v367, %v443
        %v447 = vadd.f32 %v372, %v443
        %v448 = vadd.f32 %v377, %v443
        %v449 = vadd.f32 %v382, %v443
        %v450 = vadd.f32 %v387, %v443
        %v451 = vadd.f32 %v392, %v443
        %v452 = vadd.f32 %v397, %v443
        %v453 = vadd.f32 %v402, %v443
        %v454 = vadd.f32 %v407, %v443
        %v455 = vadd.f32 %v412, %v443
        %v456 = vadd.f32 %v417, %v443
        %v457 = vadd.f32 %v422, %v443
        %v458 = vadd.f32 %v427, %v443
        %v459 = vadd.f32 %v432, %v443
        %v460 = vadd.f32 %v437, %v443
        %vm461 = vcmp.ge.f32.partialorder %v445, 0.0
        %vm462 = vcmp.ge.f32.partialorder %v446, 0.0
        %vm463 = vcmp.ge.f32.partialorder %v447, 0.0
        %vm464 = vcmp.ge.f32.partialorder %v448, 0.0
        %vm465 = vcmp.ge.f32.partialorder %v449, 0.0
        %vm466 = vcmp.ge.f32.partialorder %v450, 0.0
        %vm467 = vcmp.ge.f32.partialorder %v451, 0.0
        %vm468 = vcmp.ge.f32.partialorder %v452, 0.0
        %vm469 = vcmp.ge.f32.partialorder %v453, 0.0
        %vm470 = vcmp.ge.f32.partialorder %v454, 0.0
        %vm471 = vcmp.ge.f32.partialorder %v455, 0.0
        %vm472 = vcmp.ge.f32.partialorder %v456, 0.0
        %vm473 = vcmp.ge.f32.partialorder %v457, 0.0
        %vm474 = vcmp.ge.f32.partialorder %v458, 0.0
        %vm475 = vcmp.ge.f32.partialorder %v459, 0.0
        %vm476 = vcmp.ge.f32.partialorder %v460, 0.0
        %v477 = vmul.f32 %v445, 0.2
        %v478 = vmul.f32 %v446, 0.2
        %v479 = vmul.f32 %v447, 0.2
        %v480 = vmul.f32 %v448, 0.2
        %v481 = vmul.f32 %v449, 0.2
        %v482 = vmul.f32 %v450, 0.2
        %v483 = vmul.f32 %v451, 0.2
        %v484 = vmul.f32 %v452, 0.2
        %v485 = vmul.f32 %v453, 0.2
        %v486 = vmul.f32 %v454, 0.2
        %v487 = vmul.f32 %v455, 0.2
        %v488 = vmul.f32 %v456, 0.2
        %v489 = vmul.f32 %v457, 0.2
        %v490 = vmul.f32 %v458, 0.2
        %v491 = vmul.f32 %v459, 0.2
        %v492 = vmul.f32 %v460, 0.2
        %v493 = vsel %vm461, %v445, %v477
        %v494 = vsel %vm462, %v446, %v478
        %v495 = vsel %vm463, %v447, %v479
        %v496 = vsel %vm464, %v448, %v480
        %v497 = vsel %vm465, %v449, %v481
        %v498 = vsel %vm466, %v450, %v482
        %v499 = vsel %vm467, %v451, %v483
        %v500 = vsel %vm468, %v452, %v484
        %v501 = vsel %vm469, %v453, %v485
        %v502 = vsel %vm470, %v454, %v486
        %v503 = vsel %vm471, %v455, %v487
        %v504 = vsel %vm472, %v456, %v488
        %v505 = vsel %vm473, %v457, %v489
        %v506 = vsel %vm474, %v458, %v490
        %v507 = vsel %vm475, %v459, %v491
        %v508 = vsel %vm476, %v460, %v492
        %v509 = vsub.f32 0.0, %v493
        %v510 = vsub.f32 0.0, %v494
        %v511 = vsub.f32 0.0, %v495
        %v512 = vsub.f32 0.0, %v496
        %v513 = vsub.f32 0.0, %v497
        %v514 = vsub.f32 0.0, %v498
        %v515 = vsub.f32 0.0, %v499
        %v516 = vsub.f32 0.0, %v500
        %v517 = vsub.f32 0.0, %v501
        %v518 = vsub.f32 0.0, %v502
        %v519 = vsub.f32 0.0, %v503
        %v520 = vsub.f32 0.0, %v504
        %v521 = vsub.f32 0.0, %v505
        %v522 = vsub.f32 0.0, %v506
        %v523 = vsub.f32 0.0, %v507
        %v524 = vsub.f32 0.0, %v508
        %v525 = vmul.f32 %v509, 1.442695
        %v526 = vpow.pop %v525
        %v527 = vmul.f32 %v510, 1.442695
        %v528 = vpow.pop %v527
        %v529 = vmul.f32 %v511, 1.442695
        %v530 = vpow.pop %v529
        %v531 = vmul.f32 %v512, 1.442695
        %v532 = vpow.pop %v531
        %v533 = vmul.f32 %v513, 1.442695
        %v534 = vpow.pop %v533
        %v535 = vmul.f32 %v514, 1.442695
        %v536 = vpow.pop %v535
        %v537 = vmul.f32 %v515, 1.442695
        %v538 = vpow.pop %v537
        %v539 = vmul.f32 %v516, 1.442695
        %v540 = vpow.pop %v539
        %v541 = vmul.f32 %v517, 1.442695
        %v542 = vpow.pop %v541
        %v543 = vmul.f32 %v518, 1.442695
        %v544 = vpow.pop %v543
        %v545 = vmul.f32 %v519, 1.442695
        %v546 = vpow.pop %v545
        %v547 = vmul.f32 %v520, 1.442695
        %v548 = vpow.pop %v547
        %v549 = vmul.f32 %v521, 1.442695
        %v550 = vpow.pop %v549
        %v551 = vmul.f32 %v522, 1.442695
        %v552 = vpow.pop %v551
        %v553 = vmul.f32 %v523, 1.442695
        %v554 = vpow.pop %v553
        %v555 = vmul.f32 %v524, 1.442695
        %v556 = vpow.pop %v555
        %v557 = vld [vmem:[%s264] sm:$0xff]
        %v558 = vld [vmem:[%s264 + $0x8] sm:$0xff]
        %v559 = vld [vmem:[%s264 + $0x10] sm:$0xff]
        %v560 = vld [vmem:[%s264 + $0x18] sm:$0xff]
        %v561 = vunpack.c.0.s8 %v557
        %v562 = vunpack.c.1.s8 %v557
        %v563 = vunpack.c.2.s8 %v557
        %v564 = vunpack.c.3.s8 %v557
        %v565 = vunpack.c.0.s8 %v558
        %v566 = vunpack.c.1.s8 %v558
        %v567 = vunpack.c.2.s8 %v558
        %v568 = vunpack.c.3.s8 %v558
        %v569 = vunpack.c.0.s8 %v559
        %v570 = vunpack.c.1.s8 %v559
        %v571 = vunpack.c.2.s8 %v559
        %v572 = vunpack.c.3.s8 %v559
        %v573 = vunpack.c.0.s8 %v560
        %v574 = vunpack.c.1.s8 %v560
        %v575 = vunpack.c.2.s8 %v560
        %v576 = vunpack.c.3.s8 %v560
        %v577 = vcvt.s32.f32 %v561
        %v578 = vcvt.s32.f32 %v562
        %v579 = vcvt.s32.f32 %v563
        %v580 = vcvt.s32.f32 %v564
        %v581 = vcvt.s32.f32 %v565
        %v582 = vcvt.s32.f32 %v566
        %v583 = vcvt.s32.f32 %v567
        %v584 = vcvt.s32.f32 %v568
        %v585 = vcvt.s32.f32 %v569
        %v586 = vcvt.s32.f32 %v570
        %v587 = vcvt.s32.f32 %v571
        %v588 = vcvt.s32.f32 %v572
        %v589 = vcvt.s32.f32 %v573
        %v590 = vcvt.s32.f32 %v574
        %v591 = vcvt.s32.f32 %v575
        %v592 = vcvt.s32.f32 %v576
        %v593 = vmul.f32 %v526, %v577
        %v594 = vmul.f32 %v528, %v578
        %v595 = vmul.f32 %v530, %v579
        %v596 = vmul.f32 %v532, %v580
        %v597 = vmul.f32 %v534, %v581
        %v598 = vmul.f32 %v536, %v582
        %v599 = vmul.f32 %v538, %v583
        %v600 = vmul.f32 %v540, %v584
        %v601 = vmul.f32 %v542, %v585
        %v602 = vmul.f32 %v544, %v586
        %v603 = vmul.f32 %v546, %v587
        %v604 = vmul.f32 %v548, %v588
        %v605 = vmul.f32 %v550, %v589
        %v606 = vmul.f32 %v552, %v590
        %v607 = vmul.f32 %v554, %v591
        %v608 = vmul.f32 %v556, %v592
        %v609 = vld [vmem:[#allocation2] sm:$0xff]
        %v610 = vld [vmem:[#allocation2 + $0x8] sm:$0xff]
        %v611 = vld [vmem:[#allocation2 + $0x10] sm:$0xff]
        %v612 = vld [vmem:[#allocation2 + $0x18] sm:$0xff]
        %v613 = vld [vmem:[#allocation2 + $0x20] sm:$0xff]
        %v614 = vld [vmem:[#allocation2 + $0x28] sm:$0xff]
        %v615 = vld [vmem:[#allocation2 + $0x30] sm:$0xff]
        %v616 = vld [vmem:[#allocation2 + $0x38] sm:$0xff]
        %v617 = vld [vmem:[#allocation2 + $0x40] sm:$0xff]
        %v618 = vld [vmem:[#allocation2 + $0x48] sm:$0xff]
        %v619 = vld [vmem:[#allocation2 + $0x50] sm:$0xff]
        %v620 = vld [vmem:[#allocation2 + $0x58] sm:$0xff]
        %v621 = vld [vmem:[#allocation2 + $0x60] sm:$0xff]
        %v622 = vld [vmem:[#allocation2 + $0x68] sm:$0xff]
        %v623 = vld [vmem:[#allocation2 + $0x70] sm:$0xff]
        %v624 = vld [vmem:[#allocation2 + $0x78] sm:$0xff]
        %v625 = vld [vmem:[%s314] sm:$0xff]
        %v626 = vld [vmem:[%s314 + $0x8] sm:$0xff]
        %v627 = vld [vmem:[%s314 + $0x10] sm:$0xff]
        %v628 = vld [vmem:[%s314 + $0x18] sm:$0xff]
        %v629 = vld [vmem:[%s314 + $0x20] sm:$0xff]
        %v630 = vld [vmem:[%s314 + $0x28] sm:$0xff]
        %v631 = vld [vmem:[%s314 + $0x30] sm:$0xff]
        %v632 = vld [vmem:[%s314 + $0x38] sm:$0xff]
        %v633 = vld [vmem:[%s314 + $0x40] sm:$0xff]
        %v634 = vld [vmem:[%s314 + $0x48] sm:$0xff]
        %v635 = vld [vmem:[%s314 + $0x50] sm:$0xff]
        %v636 = vld [vmem:[%s314 + $0x58] sm:$0xff]
        %v637 = vld [vmem:[%s314 + $0x60] sm:$0xff]
        %v638 = vld [vmem:[%s314 + $0x68] sm:$0xff]
        %v639 = vld [vmem:[%s314 + $0x70] sm:$0xff]
        %v640 = vld [vmem:[%s314 + $0x78] sm:$0xff]
        %641 = vmatprep.subr.mxu0 0.0
        %642 = vmatpush1.msra.mxu0 %v640
        %643 = vmatprep.subr.mxu0 0.0
        %644 = vmatpush1.msra.mxu0 %v639
        %645 = vmatprep.subr.mxu0 0.0
        %646 = vmatpush1.msra.mxu0 %v638
        %647 = vmatprep.subr.mxu0 0.0
        %648 = vmatpush1.msra.mxu0 %v637
        %649 = vmatprep.subr.mxu0 0.0
        %650 = vmatpush1.msra.mxu0 %v636
        %651 = vmatprep.subr.mxu0 0.0
        %652 = vmatpush1.msra.mxu0 %v635
        %653 = vmatprep.subr.mxu0 0.0
        %654 = vmatpush1.msra.mxu0 %v634
        %655 = vmatprep.subr.mxu0 0.0
        %656 = vmatpush1.msra.mxu0 %v633
        %657 = vmatprep.subr.mxu0 0.0
        %658 = vmatpush1.msra.mxu0 %v632
        %659 = vmatprep.subr.mxu0 0.0
        %660 = vmatpush1.msra.mxu0 %v631
        %661 = vmatprep.subr.mxu0 0.0
        %662 = vmatpush1.msra.mxu0 %v630
        %663 = vmatprep.subr.mxu0 0.0
        %664 = vmatpush1.msra.mxu0 %v629
        %665 = vmatprep.subr.mxu0 0.0
        %666 = vmatpush1.msra.mxu0 %v628
        %667 = vmatprep.subr.mxu0 0.0
        %668 = vmatpush1.msra.mxu0 %v627
        %669 = vmatprep.subr.mxu0 0.0
        %670 = vmatpush1.msra.mxu0 %v626
        %671 = vmatprep.subr.mxu0 0.0
        %672 = vmatpush1.msra.mxu0 %v625
        %673 = vmatprep.subr.mxu0 0.0
        %674 = vmatpush2.msra.mxu0 0.0
        %675 = vmatprep.subr.mxu0 0.0
        %676 = vmatpush2.msra.mxu0 0.0
        %677 = vmatprep.subr.mxu0 0.0
        %678 = vmatpush2.msra.mxu0 0.0
        %679 = vmatprep.subr.mxu0 0.0
        %680 = vmatpush2.msra.mxu0 0.0
        %681 = vmatprep.subr.mxu0 0.0
        %682 = vmatpush2.msra.mxu0 0.0
        %683 = vmatprep.subr.mxu0 0.0
        %684 = vmatpush2.msra.mxu0 0.0
        %685 = vmatprep.subr.mxu0 0.0
        %686 = vmatpush2.msra.mxu0 0.0
        %687 = vmatprep.subr.mxu0 0.0
        %688 = vmatpush2.msra.mxu0 0.0
        %689 = vmatprep.subr.mxu0 0.0
        %690 = vmatpush2.msra.mxu0 0.0
        %691 = vmatprep.subr.mxu0 0.0
        %692 = vmatpush2.msra.mxu0 0.0
        %693 = vmatprep.subr.mxu0 0.0
        %694 = vmatpush2.msra.mxu0 0.0
        %695 = vmatprep.subr.mxu0 0.0
        %696 = vmatpush2.msra.mxu0 0.0
        %697 = vmatprep.subr.mxu0 0.0
        %698 = vmatpush2.msra.mxu0 0.0
        %699 = vmatprep.subr.mxu0 0.0
        %700 = vmatpush2.msra.mxu0 0.0
        %701 = vmatprep.subr.mxu0 0.0
        %702 = vmatpush2.msra.mxu0 0.0
        %703 = vmatprep.subr.mxu0 0.0
        %704 = vmatpush2.msra.mxu0 0.0
        %705 = vmatprep.mubr.f32.mxu0 0.0
        %706 = vmatmul.mubr.f32.gmra.mxu0 %v593
        %v707 = vpop.f32.mrf.mxu0
        %v708 = vadd.f32 0.0, %v707
        %v709 = vpop.f32.mrf.mxu0
        %710 = vmatprep.mubr.f32.mxu0 0.0
        %711 = vmatmul.mubr.f32.gmra.mxu0 %v594
        %v712 = vpop.f32.mrf.mxu0
        %v713 = vadd.f32 0.0, %v712
        %v714 = vpop.f32.mrf.mxu0
        %715 = vmatprep.mubr.f32.mxu0 0.0
        %716 = vmatmul.mubr.f32.gmra.mxu0 %v595
        %v717 = vpop.f32.mrf.mxu0
        %v718 = vadd.f32 0.0, %v717
        %v719 = vpop.f32.mrf.mxu0
        %720 = vmatprep.mubr.f32.mxu0 0.0
        %721 = vmatmul.mubr.f32.gmra.mxu0 %v596
        %v722 = vpop.f32.mrf.mxu0
        %v723 = vadd.f32 0.0, %v722
        %v724 = vpop.f32.mrf.mxu0
        %725 = vmatprep.mubr.f32.mxu0 0.0
        %726 = vmatmul.mubr.f32.gmra.mxu0 %v597
        %v727 = vpop.f32.mrf.mxu0
        %v728 = vadd.f32 0.0, %v727
        %v729 = vpop.f32.mrf.mxu0
        %730 = vmatprep.mubr.f32.mxu0 0.0
        %731 = vmatmul.mubr.f32.gmra.mxu0 %v598
        %v732 = vpop.f32.mrf.mxu0
        %v733 = vadd.f32 0.0, %v732
        %v734 = vpop.f32.mrf.mxu0
        %735 = vmatprep.mubr.f32.mxu0 0.0
        %736 = vmatmul.mubr.f32.gmra.mxu0 %v599
        %v737 = vpop.f32.mrf.mxu0
        %v738 = vadd.f32 0.0, %v737
        %v739 = vpop.f32.mrf.mxu0
        %740 = vmatprep.mubr.f32.mxu0 0.0
        %741 = vmatmul.mubr.f32.gmra.mxu0 %v600
        %v742 = vpop.f32.mrf.mxu0
        %v743 = vadd.f32 0.0, %v742
        %v744 = vpop.f32.mrf.mxu0
        %745 = vmatprep.mubr.f32.mxu0 0.0
        %746 = vmatmul.mubr.f32.gmra.mxu0 %v601
        %v747 = vpop.f32.mrf.mxu0
        %v748 = vadd.f32 0.0, %v747
        %v749 = vpop.f32.mrf.mxu0
        %750 = vmatprep.mubr.f32.mxu0 0.0
        %751 = vmatmul.mubr.f32.gmra.mxu0 %v602
        %v752 = vpop.f32.mrf.mxu0
        %v753 = vadd.f32 0.0, %v752
        %v754 = vpop.f32.mrf.mxu0
        %755 = vmatprep.mubr.f32.mxu0 0.0
        %756 = vmatmul.mubr.f32.gmra.mxu0 %v603
        %v757 = vpop.f32.mrf.mxu0
        %v758 = vadd.f32 0.0, %v757
        %v759 = vpop.f32.mrf.mxu0
        %760 = vmatprep.mubr.f32.mxu0 0.0
        %761 = vmatmul.mubr.f32.gmra.mxu0 %v604
        %v762 = vpop.f32.mrf.mxu0
        %v763 = vadd.f32 0.0, %v762
        %v764 = vpop.f32.mrf.mxu0
        %765 = vmatprep.mubr.f32.mxu0 0.0
        %766 = vmatmul.mubr.f32.gmra.mxu0 %v605
        %v767 = vpop.f32.mrf.mxu0
        %v768 = vadd.f32 0.0, %v767
        %v769 = vpop.f32.mrf.mxu0
        %770 = vmatprep.mubr.f32.mxu0 0.0
        %771 = vmatmul.mubr.f32.gmra.mxu0 %v606
        %v772 = vpop.f32.mrf.mxu0
        %v773 = vadd.f32 0.0, %v772
        %v774 = vpop.f32.mrf.mxu0
        %775 = vmatprep.mubr.f32.mxu0 0.0
        %776 = vmatmul.mubr.f32.gmra.mxu0 %v607
        %v777 = vpop.f32.mrf.mxu0
        %v778 = vadd.f32 0.0, %v777
        %v779 = vpop.f32.mrf.mxu0
        %780 = vmatprep.mubr.f32.mxu0 0.0
        %781 = vmatmul.mubr.f32.gmra.mxu0 %v608
        %v782 = vpop.f32.mrf.mxu0
        %v783 = vadd.f32 0.0, %v782
        %v784 = vpop.f32.mrf.mxu0
        %785 = vdwg.mxu0
        %v786 = vadd.f32 %v609, %v708
        %v787 = vadd.f32 %v610, %v713
        %v788 = vadd.f32 %v611, %v718
        %v789 = vadd.f32 %v612, %v723
        %v790 = vadd.f32 %v613, %v728
        %v791 = vadd.f32 %v614, %v733
        %v792 = vadd.f32 %v615, %v738
        %v793 = vadd.f32 %v616, %v743
        %v794 = vadd.f32 %v617, %v748
        %v795 = vadd.f32 %v618, %v753
        %v796 = vadd.f32 %v619, %v758
        %v797 = vadd.f32 %v620, %v763
        %v798 = vadd.f32 %v621, %v768
        %v799 = vadd.f32 %v622, %v773
        %v800 = vadd.f32 %v623, %v778
        %v801 = vadd.f32 %v624, %v783
        %802 = vst [vmem:[#allocation2] sm:$0xff] %v786
        %803 = vst [vmem:[#allocation2 + $0x8] sm:$0xff] %v787
        %804 = vst [vmem:[#allocation2 + $0x10] sm:$0xff] %v788
        %805 = vst [vmem:[#allocation2 + $0x18] sm:$0xff] %v789
        %806 = vst [vmem:[#allocation2 + $0x20] sm:$0xff] %v790
        %807 = vst [vmem:[#allocation2 + $0x28] sm:$0xff] %v791
        %808 = vst [vmem:[#allocation2 + $0x30] sm:$0xff] %v792
        %809 = vst [vmem:[#allocation2 + $0x38] sm:$0xff] %v793
        %810 = vst [vmem:[#allocation2 + $0x40] sm:$0xff] %v794
        %811 = vst [vmem:[#allocation2 + $0x48] sm:$0xff] %v795
        %812 = vst [vmem:[#allocation2 + $0x50] sm:$0xff] %v796
        %813 = vst [vmem:[#allocation2 + $0x58] sm:$0xff] %v797
        %814 = vst [vmem:[#allocation2 + $0x60] sm:$0xff] %v798
        %815 = vst [vmem:[#allocation2 + $0x68] sm:$0xff] %v799
        %816 = vst [vmem:[#allocation2 + $0x70] sm:$0xff] %v800
        %817 = vst [vmem:[#allocation2 + $0x78] sm:$0xff] %v801
        %p818 = scmp.eq.s32.totalorder %s20, 2
        // Predicated region
        $region79: #{sp_graph_attention.1} parent=69 // pred_check
          %p819 = pneg %p818
        $region80: #{sp_graph_attention.1} parent=69 // pred_check_branch
          %821 = sbr.rel (%p819) target = $region82
        $region81: #{sp_graph_attention.1} parent=69 // pred_region
          %v822 = vld [vmem:[#allocation2] sm:$0xff]
          %v823 = vld [vmem:[#allocation2 + $0x8] sm:$0xff]
          %v824 = vld [vmem:[#allocation2 + $0x10] sm:$0xff]
          %v825 = vld [vmem:[#allocation2 + $0x18] sm:$0xff]
          %v826 = vld [vmem:[#allocation2 + $0x20] sm:$0xff]
          %v827 = vld [vmem:[#allocation2 + $0x28] sm:$0xff]
          %v828 = vld [vmem:[#allocation2 + $0x30] sm:$0xff]
          %v829 = vld [vmem:[#allocation2 + $0x38] sm:$0xff]
          %v830 = vld [vmem:[#allocation2 + $0x40] sm:$0xff]
          %v831 = vld [vmem:[#allocation2 + $0x48] sm:$0xff]
          %v832 = vld [vmem:[#allocation2 + $0x50] sm:$0xff]
          %v833 = vld [vmem:[#allocation2 + $0x58] sm:$0xff]
          %v834 = vld [vmem:[#allocation2 + $0x60] sm:$0xff]
          %v835 = vld [vmem:[#allocation2 + $0x68] sm:$0xff]
          %v836 = vld [vmem:[#allocation2 + $0x70] sm:$0xff]
          %v837 = vld [vmem:[#allocation2 + $0x78] sm:$0xff]
          %v838 = vrcp.pop %v822
          %v839 = vrcp.pop %v823
          %v840 = vrcp.pop %v824
          %v841 = vrcp.pop %v825
          %v842 = vrcp.pop %v826
          %v843 = vrcp.pop %v827
          %v844 = vrcp.pop %v828
          %v845 = vrcp.pop %v829
          %v846 = vrcp.pop %v830
          %v847 = vrcp.pop %v831
          %v848 = vrcp.pop %v832
          %v849 = vrcp.pop %v833
          %v850 = vrcp.pop %v834
          %v851 = vrcp.pop %v835
          %v852 = vrcp.pop %v836
          %v853 = vrcp.pop %v837
          %855 = vset.pattern.permute.xlu0 16
          %856 = vperm.xlu0 %855, %v838
          %v857 = vpop.permute.xlu0 %856
          %860 = vset.pattern.permute.xlu0 16
          %861 = vperm.xlu0 %860, %v839
          %v862 = vpop.permute.xlu0 %861
          %865 = vset.pattern.permute.xlu0 16
          %866 = vperm.xlu0 %865, %v840
          %v867 = vpop.permute.xlu0 %866
          %870 = vset.pattern.permute.xlu0 16
          %871 = vperm.xlu0 %870, %v841
          %v872 = vpop.permute.xlu0 %871
          %875 = vset.pattern.permute.xlu0 16
          %876 = vperm.xlu0 %875, %v842
          %v877 = vpop.permute.xlu0 %876
          %880 = vset.pattern.permute.xlu0 16
          %881 = vperm.xlu0 %880, %v843
          %v882 = vpop.permute.xlu0 %881
          %885 = vset.pattern.permute.xlu0 16
          %886 = vperm.xlu0 %885, %v844
          %v887 = vpop.permute.xlu0 %886
          %890 = vset.pattern.permute.xlu0 16
          %891 = vperm.xlu0 %890, %v845
          %v892 = vpop.permute.xlu0 %891
          %895 = vset.pattern.permute.xlu0 16
          %896 = vperm.xlu0 %895, %v846
          %v897 = vpop.permute.xlu0 %896
          %900 = vset.pattern.permute.xlu0 16
          %901 = vperm.xlu0 %900, %v847
          %v902 = vpop.permute.xlu0 %901
          %905 = vset.pattern.permute.xlu0 16
          %906 = vperm.xlu0 %905, %v848
          %v907 = vpop.permute.xlu0 %906
          %910 = vset.pattern.permute.xlu0 16
          %911 = vperm.xlu0 %910, %v849
          %v912 = vpop.permute.xlu0 %911
          %915 = vset.pattern.permute.xlu0 16
          %916 = vperm.xlu0 %915, %v850
          %v917 = vpop.permute.xlu0 %916
          %920 = vset.pattern.permute.xlu0 16
          %921 = vperm.xlu0 %920, %v851
          %v922 = vpop.permute.xlu0 %921
          %925 = vset.pattern.permute.xlu0 16
          %926 = vperm.xlu0 %925, %v852
          %v927 = vpop.permute.xlu0 %926
          %930 = vset.pattern.permute.xlu0 16
          %931 = vperm.xlu0 %930, %v853
          %v932 = vpop.permute.xlu0 %931
          %v934 = vmul.f32 %v822, %v857
          %v935 = vmul.f32 %v823, %v862
          %v936 = vmul.f32 %v824, %v867
          %v937 = vmul.f32 %v825, %v872
          %v938 = vmul.f32 %v826, %v877
          %v939 = vmul.f32 %v827, %v882
          %v940 = vmul.f32 %v828, %v887
          %v941 = vmul.f32 %v829, %v892
          %v942 = vmul.f32 %v830, %v897
          %v943 = vmul.f32 %v831, %v902
          %v944 = vmul.f32 %v832, %v907
          %v945 = vmul.f32 %v833, %v912
          %v946 = vmul.f32 %v834, %v917
          %v947 = vmul.f32 %v835, %v922
          %v948 = vmul.f32 %v836, %v927
          %v949 = vmul.f32 %v837, %v932
          %vm950 = vcmp.ne.f32.partialorder %v934, %v934
          %vm951 = vcmp.ne.f32.partialorder %v935, %v935
          %vm952 = vcmp.ne.f32.partialorder %v936, %v936
          %vm953 = vcmp.ne.f32.partialorder %v937, %v937
          %vm954 = vcmp.ne.f32.partialorder %v938, %v938
          %vm955 = vcmp.ne.f32.partialorder %v939, %v939
          %vm956 = vcmp.ne.f32.partialorder %v940, %v940
          %vm957 = vcmp.ne.f32.partialorder %v941, %v941
          %vm958 = vcmp.ne.f32.partialorder %v942, %v942
          %vm959 = vcmp.ne.f32.partialorder %v943, %v943
          %vm960 = vcmp.ne.f32.partialorder %v944, %v944
          %vm961 = vcmp.ne.f32.partialorder %v945, %v945
          %vm962 = vcmp.ne.f32.partialorder %v946, %v946
          %vm963 = vcmp.ne.f32.partialorder %v947, %v947
          %vm964 = vcmp.ne.f32.partialorder %v948, %v948
          %vm965 = vcmp.ne.f32.partialorder %v949, %v949
          %v966 = vsel %vm950, 0.0, %v934
          %v967 = vsel %vm951, 0.0, %v935
          %v968 = vsel %vm952, 0.0, %v936
          %v969 = vsel %vm953, 0.0, %v937
          %v970 = vsel %vm954, 0.0, %v938
          %v971 = vsel %vm955, 0.0, %v939
          %v972 = vsel %vm956, 0.0, %v940
          %v973 = vsel %vm957, 0.0, %v941
          %v974 = vsel %vm958, 0.0, %v942
          %v975 = vsel %vm959, 0.0, %v943
          %v976 = vsel %vm960, 0.0, %v944
          %v977 = vsel %vm961, 0.0, %v945
          %v978 = vsel %vm962, 0.0, %v946
          %v979 = vsel %vm963, 0.0, %v947
          %v980 = vsel %vm964, 0.0, %v948
          %v981 = vsel %vm965, 0.0, %v949
          %vm982 = vcmp.gt.f32.partialorder %v966, 0.0
          %vm983 = vcmp.gt.f32.partialorder %v967, 0.0
          %vm984 = vcmp.gt.f32.partialorder %v968, 0.0
          %vm985 = vcmp.gt.f32.partialorder %v969, 0.0
          %vm986 = vcmp.gt.f32.partialorder %v970, 0.0
          %vm987 = vcmp.gt.f32.partialorder %v971, 0.0
          %vm988 = vcmp.gt.f32.partialorder %v972, 0.0
          %vm989 = vcmp.gt.f32.partialorder %v973, 0.0
          %vm990 = vcmp.gt.f32.partialorder %v974, 0.0
          %vm991 = vcmp.gt.f32.partialorder %v975, 0.0
          %vm992 = vcmp.gt.f32.partialorder %v976, 0.0
          %vm993 = vcmp.gt.f32.partialorder %v977, 0.0
          %vm994 = vcmp.gt.f32.partialorder %v978, 0.0
          %vm995 = vcmp.gt.f32.partialorder %v979, 0.0
          %vm996 = vcmp.gt.f32.partialorder %v980, 0.0
          %vm997 = vcmp.gt.f32.partialorder %v981, 0.0
          %v998 = vmul.f32 %v966, 1.442695
          %v999 = vpow.pop %v998
          %v1000 = vmul.f32 %v967, 1.442695
          %v1001 = vpow.pop %v1000
          %v1002 = vmul.f32 %v968, 1.442695
          %v1003 = vpow.pop %v1002
          %v1004 = vmul.f32 %v969, 1.442695
          %v1005 = vpow.pop %v1004
          %v1006 = vmul.f32 %v970, 1.442695
          %v1007 = vpow.pop %v1006
          %v1008 = vmul.f32 %v971, 1.442695
          %v1009 = vpow.pop %v1008
          %v1010 = vmul.f32 %v972, 1.442695
          %v1011 = vpow.pop %v1010
          %v1012 = vmul.f32 %v973, 1.442695
          %v1013 = vpow.pop %v1012
          %v1014 = vmul.f32 %v974, 1.442695
          %v1015 = vpow.pop %v1014
          %v1016 = vmul.f32 %v975, 1.442695
          %v1017 = vpow.pop %v1016
          %v1018 = vmul.f32 %v976, 1.442695
          %v1019 = vpow.pop %v1018
          %v1020 = vmul.f32 %v977, 1.442695
          %v1021 = vpow.pop %v1020
          %v1022 = vmul.f32 %v978, 1.442695
          %v1023 = vpow.pop %v1022
          %v1024 = vmul.f32 %v979, 1.442695
          %v1025 = vpow.pop %v1024
          %v1026 = vmul.f32 %v980, 1.442695
          %v1027 = vpow.pop %v1026
          %v1028 = vmul.f32 %v981, 1.442695
          %v1029 = vpow.pop %v1028
          %v1030 = vsub.f32 %v999, 1.0
          %v1031 = vsub.f32 %v1001, 1.0
          %v1032 = vsub.f32 %v1003, 1.0
          %v1033 = vsub.f32 %v1005, 1.0
          %v1034 = vsub.f32 %v1007, 1.0
          %v1035 = vsub.f32 %v1009, 1.0
          %v1036 = vsub.f32 %v1011, 1.0
          %v1037 = vsub.f32 %v1013, 1.0
          %v1038 = vsub.f32 %v1015, 1.0
          %v1039 = vsub.f32 %v1017, 1.0
          %v1040 = vsub.f32 %v1019, 1.0
          %v1041 = vsub.f32 %v1021, 1.0
          %v1042 = vsub.f32 %v1023, 1.0
          %v1043 = vsub.f32 %v1025, 1.0
          %v1044 = vsub.f32 %v1027, 1.0
          %v1045 = vsub.f32 %v1029, 1.0
          %v1046 = vsel %vm982, %v966, %v1030
          %v1047 = vsel %vm983, %v967, %v1031
          %v1048 = vsel %vm984, %v968, %v1032
          %v1049 = vsel %vm985, %v969, %v1033
          %v1050 = vsel %vm986, %v970, %v1034
          %v1051 = vsel %vm987, %v971, %v1035
          %v1052 = vsel %vm988, %v972, %v1036
          %v1053 = vsel %vm989, %v973, %v1037
          %v1054 = vsel %vm990, %v974, %v1038
          %v1055 = vsel %vm991, %v975, %v1039
          %v1056 = vsel %vm992, %v976, %v1040
          %v1057 = vsel %vm993, %v977, %v1041
          %v1058 = vsel %vm994, %v978, %v1042
          %v1059 = vsel %vm995, %v979, %v1043
          %v1060 = vsel %vm996, %v980, %v1044
          %v1061 = vsel %vm997, %v981, %v1045
          %1062 = vst [vmem:[%s320] sm:$0xff] %v1046
          %1063 = vst [vmem:[%s320 + $0x8] sm:$0xff] %v1047
          %1064 = vst [vmem:[%s320 + $0x10] sm:$0xff] %v1048
          %1065 = vst [vmem:[%s320 + $0x18] sm:$0xff] %v1049
          %1066 = vst [vmem:[%s320 + $0x20] sm:$0xff] %v1050
          %1067 = vst [vmem:[%s320 + $0x28] sm:$0xff] %v1051
          %1068 = vst [vmem:[%s320 + $0x30] sm:$0xff] %v1052
          %1069 = vst [vmem:[%s320 + $0x38] sm:$0xff] %v1053
          %1070 = vst [vmem:[%s320 + $0x40] sm:$0xff] %v1054
          %1071 = vst [vmem:[%s320 + $0x48] sm:$0xff] %v1055
          %1072 = vst [vmem:[%s320 + $0x50] sm:$0xff] %v1056
          %1073 = vst [vmem:[%s320 + $0x58] sm:$0xff] %v1057
          %1074 = vst [vmem:[%s320 + $0x60] sm:$0xff] %v1058
          %1075 = vst [vmem:[%s320 + $0x68] sm:$0xff] %v1059
          %1076 = vst [vmem:[%s320 + $0x70] sm:$0xff] %v1060
          %1077 = vst [vmem:[%s320 + $0x78] sm:$0xff] %v1061
        $region82: #{sp_graph_attention.1} parent=69 // pred_fallthru
          _
        %s1078 = smul.u32 16, %s19
        %p1079 = scmp.lt.s32.totalorder %s1078, 31
        %s1080 = scalar_select %p1079, %s1078, 31
        %s1081 = smul.addr %s1080, 8
        %s1082 = scalar_lea.vmem %s4, %s1081
        // Predicated region
        $region83: #{sp_graph_attention.1} parent=69 // pred_check
          %p1083 = pneg %p151
        $region84: #{sp_graph_attention.1} parent=69 // pred_check_branch
          %1085 = sbr.rel (%p1083) target = $region86
        $region85: #{sp_graph_attention.1} parent=69 // pred_region
          %s1086 = smul.u32 16, %s19
        $region86: #{sp_graph_attention.1} parent=69 // pred_fallthru
          _
      $region70: #{sp_graph_attention.1} parent=5 // pred_fallthru
        _
      %p1087 = scmp.le.s32.totalorder 2, %s10
      // Predicated region
      $region87: #{sp_graph_attention.1} parent=5 // pred_check
        %p1088 = pneg %p1087
      $region88: #{sp_graph_attention.1} parent=5 // pred_check_branch
        %1090 = sbr.rel (%p1088) target = $region90
      $region89: #{sp_graph_attention.1} parent=5 // pred_region
        %s1091 = ssub.s32 %s10, 2
        // Predicated region
        $region91: #{sp_graph_attention.1} parent=89 // pred_check
          %p1092 = pneg %p157
        $region92: #{sp_graph_attention.1} parent=89 // pred_check_branch
          %1094 = sbr.rel (%p1092) target = $region94
        $region93: #{sp_graph_attention.1} parent=89 // pred_region
          %s1095 = smul.u32 16, %s21
          %p1096 = scmp.lt.s32.totalorder %s1095, 31
          %s1097 = scalar_select %p1096, %s1095, 31
          %s1098 = smul.addr %s1097, 8
          %s1099 = scalar_lea.vmem %s4, %s1098
        $region94: #{sp_graph_attention.1} parent=89 // pred_fallthru
          _
      $region90: #{sp_graph_attention.1} parent=5 // pred_fallthru
        _
    $region6: #{sp_graph_attention.1} parent=1 // loop_footer
      %s14 = sadd.s32 1, %s10
    $region7: #{sp_graph_attention.1} parent=1 // loop_footer_branch
      %9 = sbr.rel target = $region3
    $region8: #{sp_graph_attention.1} parent=1 // loop_exit
      _

</llo_original>
